<compile_context>
chip_gen: v5e
topology: v5e:2x2
jax: 0.10.0
libtpu: 0.0.40
codegen_flags: <defaults>
</compile_context>

<pallas_src>
import jax
import jax.numpy as jnp
from jax.experimental import pallas as pl
from jax.experimental.pallas import tpu as pltpu


def _rope_kernel(x_ref, cos_ref, sin_hi_ref, sin_lo_ref, o_ref):
    # x_ref:   (ts, n_h, h_d)   -- one sequence tile of one batch element
    # cos_ref / sin_hi_ref / sin_lo_ref: (ts, h_d) interleaved tables
    x = x_ref[...].astype(jnp.float32)
    h_d = x.shape[-1]

    # Hoisted head-broadcasts (each used exactly once below).
    cos = cos_ref[...][:, None, :]        # (ts, 1, h_d) -> broadcast over heads
    s_hi = sin_hi_ref[...][:, None, :]
    s_lo = sin_lo_ref[...][:, None, :]

    # Lane rotations along the head dim (XLU):
    #   x_hi[..., i] = x[..., i+1]  (partner for even lanes)
    #   x_lo[..., i] = x[..., i-1]  (partner for odd lanes)
    # Wrap-around lanes are multiplied by the zero entries of S_hi / S_lo.
    x_hi = pltpu.roll(x, h_d - 1, 2)
    x_lo = pltpu.roll(x, 1, 2)

    o_ref[...] = (x * cos + x_hi * s_hi + x_lo * s_lo).astype(o_ref.dtype)


def _pick_seq_tile(s, n_h, h_d, itemsize, target_block_bytes=1 << 20):
    """Pick a sequence tile: ~1 MiB of x per block, multiple of 8 (or == s)."""
    row_bytes = max(1, n_h * h_d * itemsize)
    target = max(1, target_block_bytes // row_bytes)
    if target >= s:
        return s
    ts = (target // 8) * 8
    while ts >= 8:
        if s % ts == 0:
            return ts
        ts -= 8
    return s  # fallback: single block over the full sequence (always legal)


class RotaryPositionalEmbeddings:
    """JAX/Pallas port of torchtune RotaryPositionalEmbeddings (forward)."""

    def __init__(self, dim: int, max_seq_len: int = 4096, base: int = 10000,
                 target_block_bytes: int = 1 << 20):
        assert dim % 2 == 0, "head dim must be even for RoPE"
        self.dim = dim
        self.base = base
        self.max_seq_len = max_seq_len
        self.target_block_bytes = target_block_bytes
        self._rope_init()

    def _rope_init(self):
        hd2 = self.dim // 2
        theta = 1.0 / (
            self.base ** (jnp.arange(0, self.dim, 2)[:hd2].astype(jnp.float32) / self.dim)
        )
        self.theta = theta
        seq_idx = jnp.arange(self.max_seq_len, dtype=jnp.float32)
        idx_theta = seq_idx[:, None] * theta[None, :]            # (max_seq_len, hd2)
        cos = jnp.cos(idx_theta)
        sin = jnp.sin(idx_theta)
        # Kept in the (max_seq_len, hd2) form only for the pure-JAX reference.
        self.cos_cache = cos
        self.sin_cache = sin
        # Interleaved tables consumed by the kernel (fp32, built once at init).
        z = jnp.zeros_like(sin)
        self.cos_il = jnp.repeat(cos, 2, axis=-1)                               # [c0,c0,c1,c1,...]
        self.sin_hi = jnp.stack([-sin, z], axis=-1).reshape(self.max_seq_len, self.dim)  # [-s0,0,...]
        self.sin_lo = jnp.stack([z, sin], axis=-1).reshape(self.max_seq_len, self.dim)   # [0,s0,...]

    def __call__(self, x: jax.Array, *, input_pos=None) -> jax.Array:
        b, s, n_h, h_d = x.shape
        assert h_d == self.dim
        assert s <= self.max_seq_len, "sequence longer than cached max_seq_len"

        ts = _pick_seq_tile(s, n_h, h_d, x.dtype.itemsize, self.target_block_bytes)
        grid = (b, s // ts)

        # x / out: full (n_h, h_d) slab per tile; batch dim squeezed out.
        x_spec = pl.BlockSpec((None, ts, n_h, h_d), lambda i, j: (i, j, 0, 0))

        if input_pos is None:
            # Feed the cached (max_seq_len, h_d) tables directly; index_map
            # ignores the batch axis -> no per-batch gather or materialization.
            if ts % 8 == 0:
                cos, sin_hi, sin_lo = self.cos_il, self.sin_hi, self.sin_lo
            else:  # ts == s and s not a multiple of 8: slice so block == full dim
                cos, sin_hi, sin_lo = self.cos_il[:s], self.sin_hi[:s], self.sin_lo[:s]
            tbl_spec = pl.BlockSpec((ts, h_d), lambda i, j: (j, 0))
        else:
            # Packed / decode path: gather per-(batch, position) tables.
            # TODO(synk): could avoid this XLA gather via scalar-prefetched
            # positions + an Element-indexed BlockSpec; traffic is ~h_d/(n_h*h_d)
            # of x so it is kept simple here.
            assert input_pos.shape == (b, s), "input_pos must have shape (b, s)"
            pos = input_pos.astype(jnp.int32)
            cos, sin_hi, sin_lo = self.cos_il[pos], self.sin_hi[pos], self.sin_lo[pos]
            tbl_spec = pl.BlockSpec((None, ts, h_d), lambda i, j: (i, j, 0))

        out = pl.pallas_call(
            _rope_kernel,
            out_shape=jax.ShapeDtypeStruct(x.shape, x.dtype),
            grid_spec=pltpu.PrefetchScalarGridSpec(
                num_scalar_prefetch=0,
                grid=grid,
                in_specs=[x_spec, tbl_spec, tbl_spec, tbl_spec],
                out_specs=x_spec,
            ),
            compiler_params=pltpu.CompilerParams(
                dimension_semantics=("parallel", "parallel"),
            ),
        )(x, cos, sin_hi, sin_lo)
        return out


def _reference_rope(x, cos_cache, sin_cache, input_pos=None):
    """Pure-JAX reference matching the PyTorch forward."""
    b, s, n_h, h_d = x.shape
    hd2 = h_d // 2
    if input_pos is None:
        cos = cos_cache[:s][None, :, None, :]        # (1, s, 1, hd2)
        sin = sin_cache[:s][None, :, None, :]
    else:
        cos = cos_cache[input_pos][:, :, None, :]    # (b, s, 1, hd2)
        sin = sin_cache[input_pos][:, :, None, :]
    xs = x.astype(jnp.float32).reshape(b, s, n_h, hd2, 2)
    out = jnp.stack(
        [xs[..., 0] * cos - xs[..., 1] * sin,
         xs[..., 1] * cos + xs[..., 0] * sin],
        axis=-1,
    ).reshape(b, s, n_h, h_d)
    return out.astype(x.dtype)


if __name__ == "__main__":
    b, s, n_h, h_d = 2, 8, 4, 32
    max_seq_len = 16

    key = jax.random.PRNGKey(0)
    x = jax.random.normal(key, (b, s, n_h, h_d), dtype=jnp.float32)

    rope = RotaryPositionalEmbeddings(dim=h_d, max_seq_len=max_seq_len, base=10000)

    # input_pos = None path
    out = jax.block_until_ready(rope(x))
    ref = _reference_rope(x, rope.cos_cache, rope.sin_cache)
    assert out.shape == x.shape and out.dtype == x.dtype
    assert jnp.allclose(out, ref, atol=1e-5, rtol=1e-5), "mismatch vs reference (input_pos=None)"

    # explicit input_pos path (different offsets per batch row)
    pos = jnp.arange(s, dtype=jnp.int32)[None, :] + jnp.array([[0], [5]], dtype=jnp.int32)
    out_pos = jax.block_until_ready(rope(x, input_pos=pos))
    ref_pos = _reference_rope(x, rope.cos_cache, rope.sin_cache, input_pos=pos)
    assert jnp.allclose(out_pos, ref_pos, atol=1e-5, rtol=1e-5), "mismatch vs reference (input_pos)"

    print("KERNEL_OK")
</pallas_src>

<mosaic_0001>
module attributes {stable_mosaic.version = 11 : i64} {
  func.func @_rope_kernel(%arg0: i32, %arg1: i32, %arg2: memref<1x8x4x32xf32, #tpu.memory_space<vmem>>, %arg3: memref<8x32xf32, #tpu.memory_space<vmem>>, %arg4: memref<8x32xf32, #tpu.memory_space<vmem>>, %arg5: memref<8x32xf32, #tpu.memory_space<vmem>>, %arg6: memref<1x8x4x32xf32, #tpu.memory_space<vmem>>) attributes {dimension_semantics = [#tpu.dimension_semantics<parallel>, #tpu.dimension_semantics<parallel>], iteration_bounds = array<i64: 2, 1>, scalar_prefetch = 0 : i64, scratch_operands = 0 : i64, tpu.core_type = #tpu.core_type<tc>, window_params = [{transform_indices = @transform_0, window_bounds = array<i64: 1, 8, 4, 32>}, {transform_indices = @transform_1, window_bounds = array<i64: 8, 32>}, {transform_indices = @transform_2, window_bounds = array<i64: 8, 32>}, {transform_indices = @transform_3, window_bounds = array<i64: 8, 32>}, {transform_indices = @transform_4, window_bounds = array<i64: 1, 8, 4, 32>}]} {
    %c0 = arith.constant 0 : index
    %c0_0 = arith.constant 0 : index
    %c0_1 = arith.constant 0 : index
    %c0_2 = arith.constant 0 : index
    %0 = vector.load %arg2[%c0, %c0_0, %c0_1, %c0_2] : memref<1x8x4x32xf32, #tpu.memory_space<vmem>>, vector<1x8x4x32xf32>
    %1 = vector.shape_cast %0 : vector<1x8x4x32xf32> to vector<8x4x32xf32>
    %c0_3 = arith.constant 0 : index
    %c0_4 = arith.constant 0 : index
    %2 = vector.load %arg3[%c0_3, %c0_4] : memref<8x32xf32, #tpu.memory_space<vmem>>, vector<8x32xf32>
    %3 = vector.shape_cast %2 : vector<8x32xf32> to vector<8x1x32xf32>
    %c0_5 = arith.constant 0 : index
    %c0_6 = arith.constant 0 : index
    %4 = vector.load %arg4[%c0_5, %c0_6] : memref<8x32xf32, #tpu.memory_space<vmem>>, vector<8x32xf32>
    %5 = vector.shape_cast %4 : vector<8x32xf32> to vector<8x1x32xf32>
    %c0_7 = arith.constant 0 : index
    %c0_8 = arith.constant 0 : index
    %6 = vector.load %arg5[%c0_7, %c0_8] : memref<8x32xf32, #tpu.memory_space<vmem>>, vector<8x32xf32>
    %7 = vector.shape_cast %6 : vector<8x32xf32> to vector<8x1x32xf32>
    %c31_i32 = arith.constant 31 : i32
    %8 = tpu.dynamic_rotate %1 by %c31_i32 dim 2 : vector<8x4x32xf32>, i32 -> vector<8x4x32xf32>
    %c1_i32 = arith.constant 1 : i32
    %9 = tpu.dynamic_rotate %1 by %c1_i32 dim 2 : vector<8x4x32xf32>, i32 -> vector<8x4x32xf32>
    %10 = vector.broadcast %3 : vector<8x1x32xf32> to vector<8x4x32xf32>
    %11 = arith.mulf %1, %10 : vector<8x4x32xf32>
    %12 = vector.broadcast %5 : vector<8x1x32xf32> to vector<8x4x32xf32>
    %13 = arith.mulf %8, %12 : vector<8x4x32xf32>
    %14 = arith.addf %11, %13 : vector<8x4x32xf32>
    %15 = vector.broadcast %7 : vector<8x1x32xf32> to vector<8x4x32xf32>
    %16 = arith.mulf %9, %15 : vector<8x4x32xf32>
    %17 = arith.addf %14, %16 : vector<8x4x32xf32>
    %c0_9 = arith.constant 0 : index
    %c0_10 = arith.constant 0 : index
    %c0_11 = arith.constant 0 : index
    %c0_12 = arith.constant 0 : index
    %18 = vector.load %arg6[%c0_9, %c0_10, %c0_11, %c0_12] : memref<1x8x4x32xf32, #tpu.memory_space<vmem>>, vector<1x8x4x32xf32>
    %19 = vector.shape_cast %18 : vector<1x8x4x32xf32> to vector<8x4x32xf32>
    %20 = vector.shape_cast %17 : vector<8x4x32xf32> to vector<1x8x4x32xf32>
    tpu.vector_store %arg6[%c0_9, %c0_10, %c0_11, %c0_12], %20 {strides = array<i32>} : memref<1x8x4x32xf32, #tpu.memory_space<vmem>>, vector<1x8x4x32xf32>,
    return
  }
  func.func @transform_0(%arg0: i32, %arg1: i32) -> (i32, i32, i32, i32) {
    %c0_i32 = arith.constant 0 : i32
    %c0_i32_0 = arith.constant 0 : i32
    %c0_i32_1 = arith.constant 0 : i32
    return %arg0, %arg1, %c0_i32, %c0_i32_0 : i32, i32, i32, i32
  }
  func.func @transform_1(%arg0: i32, %arg1: i32) -> (i32, i32) {
    %c0_i32 = arith.constant 0 : i32
    %c0_i32_0 = arith.constant 0 : i32
    return %arg1, %c0_i32 : i32, i32
  }
  func.func @transform_2(%arg0: i32, %arg1: i32) -> (i32, i32) {
    %c0_i32 = arith.constant 0 : i32
    %c0_i32_0 = arith.constant 0 : i32
    return %arg1, %c0_i32 : i32, i32
  }
  func.func @transform_3(%arg0: i32, %arg1: i32) -> (i32, i32) {
    %c0_i32 = arith.constant 0 : i32
    %c0_i32_0 = arith.constant 0 : i32
    return %arg1, %c0_i32 : i32, i32
  }
  func.func @transform_4(%arg0: i32, %arg1: i32) -> (i32, i32, i32, i32) {
    %c0_i32 = arith.constant 0 : i32
    %c0_i32_0 = arith.constant 0 : i32
    %c0_i32_1 = arith.constant 0 : i32
    return %arg0, %arg1, %c0_i32, %c0_i32_0 : i32, i32, i32, i32
  }
}

</mosaic_0001>

<llo_original>
// kernel: tpu_custom_call.1
$region0: #{tpu_custom_call.1}
  #allocation0 [shape = 'u32[]', space=smem, size = 0x4, offset = 0x4, fixed_abs, tag = 'smem constant byte address 0x4 - core index']
  #allocation1 [shape = 'u32[72,128]{1,0:T(1,128)}', space=vmem, size = 0x9000, scoped, tag = 'internal scratch']
  %s0 = inlined_call_operand.hbm [shape: f32[2,8,4,32], index: 0, kind: input, shape index: {}]
  %s1 = inlined_call_operand.hbm [shape: f32[16,32], index: 1, kind: input, shape index: {}]
  %s2 = inlined_call_operand.hbm [shape: f32[16,32], index: 2, kind: input, shape index: {}]
  %s3 = inlined_call_operand.hbm [shape: f32[16,32], index: 3, kind: input, shape index: {}]
  %s4 = inlined_call_operand.hbm [shape: f32[2,8,4,32], index: 4, kind: output, shape index: {}]
  %s5 = sld [smem:[#allocation0]]
  $region65: #{tpu_custom_call.1} parent=0
    _
  %s7 = ssub.s32 1, %s5
  %s8 = scalar_select 0, %s7, %s5
  $region1: #{tpu_custom_call.1} parent=0
    #allocation2 [shape = 'u8[32768]{0}', space=vmem, size = 0x8000, scoped, tag = 'input window, operand 0']
    #allocation3 [shape = 's32[2]{0}', space=sflag, size = 0x8, scoped, tag = 'scoped memory for tpu_custom_call.1']
    #allocation4 [shape = 's32[2]{0}', space=sflag, size = 0x8, scoped, tag = 'scoped memory for tpu_custom_call.1']
    #allocation5 [shape = 'u8[4096]{0}', space=vmem, size = 0x1000, scoped, tag = 'input window, operand 1, single buffered']
    #allocation6 [shape = 's32[1]{0}', space=sflag, size = 0x4, scoped, tag = 'scoped memory for tpu_custom_call.1']
    #allocation7 [shape = 'u8[4096]{0}', space=vmem, size = 0x1000, scoped, tag = 'input window, operand 2, single buffered']
    #allocation8 [shape = 'u8[4096]{0}', space=vmem, size = 0x1000, scoped, tag = 'input window, operand 3, single buffered']
    #allocation9 [shape = 's32[1]{0}', space=sflag, size = 0x4, scoped, tag = 'scoped memory for tpu_custom_call.1']
    #allocation10 [shape = 'u8[32768]{0}', space=vmem, size = 0x8000, scoped, tag = 'output window, operand 0']
    %9 = vsyncpa [#allocation3], 0
    %s10 = scalar_lea.sflag [#allocation3], 1
    %11 = vsyncpa %s10, 0
    %12 = vsyncpa [#allocation6], 0
    %13 = vsyncpa [#allocation9], 0
    %14 = vsyncpa [#allocation4], 0
    %s15 = scalar_lea.sflag [#allocation4], 1
    %16 = vsyncpa %s15, 0
    loop: start=0, step=1, limit=4
    $region2: #{tpu_custom_call.1} parent=1 // loop_pre_header
      _
    $region3: #{tpu_custom_call.1} parent=1 // loop_header
      %s18 = sphi 0, %s22
      %p19 = scmp.ge.s32.totalorder %s18, 4
      %s25 = sphi 0, %s37
      %s26 = sphi 0, %s33
      %s27 = sphi 0, %s25
      %s28 = sphi 0, %s26
      %s29 = sphi 0, %s27
      %s30 = sphi 0, %s28
      %s42 = sphi 0, %s44
      %s45 = sphi 0, %s42
      %s46 = sphi 0, %s45
      %s62 = sphi 0, %s46
      %s68 = sphi 0, %s70
      %s71 = sphi 0, %s68
      %s72 = sphi 0, %s71
      %s88 = sphi 0, %s72
      %s94 = sphi 0, %s96
      %s97 = sphi 0, %s94
      %s98 = sphi 0, %s97
      %s114 = sphi 0, %s98
      %s120 = sphi 0, %s122
      %s123 = sphi 0, %s120
      %s124 = sphi 0, %s123
      %s140 = sphi 0, %s124
      %s148 = sphi 0, %s150
      %s151 = sphi 0, %s148
      %s152 = sphi 0, %s151
      %s168 = sphi 0, %s152
    $region4: #{tpu_custom_call.1} parent=1 // loop_header_branch
      %21 = sbr.rel (%p19) target = $region8
    $region5: #{tpu_custom_call.1} parent=1 // loop_body
      %s23 = ssub.s32 %s18, 1
      %s24 = ssub.s32 %s18, 2
      %s31 = sadd.s32 1, %s26
      %p32 = scmp.ge.s32.totalorder %s31, 1
      %s33 = scalar_select %p32, 0, %s31
      %s34 = sadd.s32 1, %s25
      %s35 = scalar_select %p32, %s34, %s25
      %p36 = scmp.ge.s32.totalorder %s35, 2
      %s37 = scalar_select %p36, 0, %s35
      %s38 = ssub.s32 %s25, %s37
      %s39 = ssub.s32 %s26, %s33
      %s40 = sor.u32 %s38, %s39
      %p41 = scmp.eq.s32.totalorder %s40, 0
      %s43 = sadd.s32 %s42, 1
      %s44 = scalar_select %p41, %s42, %s43
      %p47 = pneg %p41
      %p48 = scmp.eq.s32.totalorder %s18, 1
      %p49 = por %p47, %p48
      %p50 = scmp.ne.s32.totalorder %s42, %s45
      %p51 = scmp.eq.s32.totalorder %s18, 0
      %p52 = por %p50, %p51
      %p53 = scmp.ne.s32.totalorder %s42, %s45
      %p54 = scmp.eq.s32.totalorder %s23, 1
      %p55 = por %p53, %p54
      %p56 = scmp.ne.s32.totalorder %s45, %s46
      %p57 = scmp.eq.s32.totalorder %s23, 0
      %p58 = por %p56, %p57
      %p59 = scmp.ne.s32.totalorder %s45, %s46
      %p60 = scmp.eq.s32.totalorder %s24, 1
      %p61 = por %p59, %p60
      %p63 = scmp.ne.s32.totalorder %s46, %s62
      %p64 = scmp.eq.s32.totalorder %s24, 0
      %p65 = por %p63, %p64
      %s66 = ssub.s32 %s26, %s33
      %p67 = scmp.eq.s32.totalorder %s66, 0
      %s69 = sadd.s32 %s68, 1
      %s70 = scalar_select %p67, %s68, %s69
      %p73 = pneg %p67
      %p74 = scmp.eq.s32.totalorder %s18, 1
      %p75 = por %p73, %p74
      %p76 = scmp.ne.s32.totalorder %s68, %s71
      %p77 = scmp.eq.s32.totalorder %s18, 0
      %p78 = por %p76, %p77
      %p79 = scmp.ne.s32.totalorder %s68, %s71
      %p80 = scmp.eq.s32.totalorder %s23, 1
      %p81 = por %p79, %p80
      %p82 = scmp.ne.s32.totalorder %s71, %s72
      %p83 = scmp.eq.s32.totalorder %s23, 0
      %p84 = por %p82, %p83
      %p85 = scmp.ne.s32.totalorder %s71, %s72
      %p86 = scmp.eq.s32.totalorder %s24, 1
      %p87 = por %p85, %p86
      %p89 = scmp.ne.s32.totalorder %s72, %s88
      %p90 = scmp.eq.s32.totalorder %s24, 0
      %p91 = por %p89, %p90
      %s92 = ssub.s32 %s26, %s33
      %p93 = scmp.eq.s32.totalorder %s92, 0
      %s95 = sadd.s32 %s94, 1
      %s96 = scalar_select %p93, %s94, %s95
      %p99 = pneg %p93
      %p100 = scmp.eq.s32.totalorder %s18, 1
      %p101 = por %p99, %p100
      %p102 = scmp.ne.s32.totalorder %s94, %s97
      %p103 = scmp.eq.s32.totalorder %s18, 0
      %p104 = por %p102, %p103
      %p105 = scmp.ne.s32.totalorder %s94, %s97
      %p106 = scmp.eq.s32.totalorder %s23, 1
      %p107 = por %p105, %p106
      %p108 = scmp.ne.s32.totalorder %s97, %s98
      %p109 = scmp.eq.s32.totalorder %s23, 0
      %p110 = por %p108, %p109
      %p111 = scmp.ne.s32.totalorder %s97, %s98
      %p112 = scmp.eq.s32.totalorder %s24, 1
      %p113 = por %p111, %p112
      %p115 = scmp.ne.s32.totalorder %s98, %s114
      %p116 = scmp.eq.s32.totalorder %s24, 0
      %p117 = por %p115, %p116
      %s118 = ssub.s32 %s26, %s33
      %p119 = scmp.eq.s32.totalorder %s118, 0
      %s121 = sadd.s32 %s120, 1
      %s122 = scalar_select %p119, %s120, %s121
      %p125 = pneg %p119
      %p126 = scmp.eq.s32.totalorder %s18, 1
      %p127 = por %p125, %p126
      %p128 = scmp.ne.s32.totalorder %s120, %s123
      %p129 = scmp.eq.s32.totalorder %s18, 0
      %p130 = por %p128, %p129
      %p131 = scmp.ne.s32.totalorder %s120, %s123
      %p132 = scmp.eq.s32.totalorder %s23, 1
      %p133 = por %p131, %p132
      %p134 = scmp.ne.s32.totalorder %s123, %s124
      %p135 = scmp.eq.s32.totalorder %s23, 0
      %p136 = por %p134, %p135
      %p137 = scmp.ne.s32.totalorder %s123, %s124
      %p138 = scmp.eq.s32.totalorder %s24, 1
      %p139 = por %p137, %p138
      %p141 = scmp.ne.s32.totalorder %s124, %s140
      %p142 = scmp.eq.s32.totalorder %s24, 0
      %p143 = por %p141, %p142
      %s144 = ssub.s32 %s25, %s37
      %s145 = ssub.s32 %s26, %s33
      %s146 = sor.u32 %s144, %s145
      %p147 = scmp.eq.s32.totalorder %s146, 0
      %s149 = sadd.s32 %s148, 1
      %s150 = scalar_select %p147, %s148, %s149
      %p153 = pneg %p147
      %p154 = scmp.eq.s32.totalorder %s18, 1
      %p155 = por %p153, %p154
      %p156 = scmp.ne.s32.totalorder %s148, %s151
      %p157 = scmp.eq.s32.totalorder %s18, 0
      %p158 = por %p156, %p157
      %p159 = scmp.ne.s32.totalorder %s148, %s151
      %p160 = scmp.eq.s32.totalorder %s23, 1
      %p161 = por %p159, %p160
      %p162 = scmp.ne.s32.totalorder %s151, %s152
      %p163 = scmp.eq.s32.totalorder %s23, 0
      %p164 = por %p162, %p163
      %p165 = scmp.ne.s32.totalorder %s151, %s152
      %p166 = scmp.eq.s32.totalorder %s24, 1
      %p167 = por %p165, %p166
      %p169 = scmp.ne.s32.totalorder %s152, %s168
      %p170 = scmp.eq.s32.totalorder %s24, 0
      %p171 = por %p169, %p170
      %p172 = scmp.le.s32.totalorder 1, %s18
      %p173 = scmp.lt.s32.totalorder %s18, 3
      %p174 = pnand %p172, %p173
      %p175 = pneg %p174
      // Predicated region
      $region9: #{tpu_custom_call.1} parent=5 // pred_check
        _
      $region10: #{tpu_custom_call.1} parent=5 // pred_check_branch
        %177 = sbr.rel (%p174) target = $region12
      $region11: #{tpu_custom_call.1} parent=5 // pred_region
        %s178 = ssub.s32 %s18, 1
        // Predicated region
        $region13: #{tpu_custom_call.1} parent=11 // pred_check
          %p179 = pneg %p84
        $region14: #{tpu_custom_call.1} parent=11 // pred_check_branch
          %181 = sbr.rel (%p179) target = $region16
        $region15: #{tpu_custom_call.1} parent=11 // pred_region
          %183 = vsyncadd [#allocation6], 0
          %s184 = smul.addr %s28, 8
          %s185 = scalar_lea.hbm %s1, %s184
          %s187 = sshll.u32 %s185, 4
          %s188 = int_to_ptr.hbm [resolvable:$true] %s187
          %s189 = sshll.u32 [#allocation5], 4
          %s190 = int_to_ptr.vmem [resolvable:$true] %s189
          %192 = dma.hbm_to_vmem [thread:$0]  %s188, 128, %s190, [#allocation6]
        $region16: #{tpu_custom_call.1} parent=11 // pred_fallthru
          _
        // Predicated region
        $region17: #{tpu_custom_call.1} parent=11 // pred_check
          %p193 = pneg %p110
        $region18: #{tpu_custom_call.1} parent=11 // pred_check_branch
          %195 = sbr.rel (%p193) target = $region20
        $region19: #{tpu_custom_call.1} parent=11 // pred_region
          %197 = vsyncadd [#allocation6], 0
          %s198 = smul.addr %s28, 8
          %s199 = scalar_lea.hbm %s2, %s198
          %s201 = sshll.u32 %s199, 4
          %s202 = int_to_ptr.hbm [resolvable:$true] %s201
          %s203 = sshll.u32 [#allocation7], 4
          %s204 = int_to_ptr.vmem [resolvable:$true] %s203
          %206 = dma.hbm_to_vmem [thread:$0]  %s202, 128, %s204, [#allocation6]
        $region20: #{tpu_custom_call.1} parent=11 // pred_fallthru
          _
        // Predicated region
        $region21: #{tpu_custom_call.1} parent=11 // pred_check
          %p207 = pneg %p136
        $region22: #{tpu_custom_call.1} parent=11 // pred_check_branch
          %209 = sbr.rel (%p207) target = $region24
        $region23: #{tpu_custom_call.1} parent=11 // pred_region
          %211 = vsyncadd [#allocation9], 0
          %s212 = smul.addr %s28, 8
          %s213 = scalar_lea.hbm %s3, %s212
          %s215 = sshll.u32 %s213, 4
          %s216 = int_to_ptr.hbm [resolvable:$true] %s215
          %s217 = sshll.u32 [#allocation8], 4
          %s218 = int_to_ptr.vmem [resolvable:$true] %s217
          %220 = dma.hbm_to_vmem [thread:$0]  %s216, 128, %s218, [#allocation9]
        $region24: #{tpu_custom_call.1} parent=11 // pred_fallthru
          _
      $region12: #{tpu_custom_call.1} parent=5 // pred_fallthru
        _
      %p221 = scmp.lt.s32.totalorder %s18, 2
      // Predicated region
      $region25: #{tpu_custom_call.1} parent=5 // pred_check
        %p222 = pneg %p221
      $region26: #{tpu_custom_call.1} parent=5 // pred_check_branch
        %224 = sbr.rel (%p222) target = $region28
      $region27: #{tpu_custom_call.1} parent=5 // pred_region
        // Predicated region
        $region29: #{tpu_custom_call.1} parent=27 // pred_check
          %p225 = pneg %p52
        $region30: #{tpu_custom_call.1} parent=27 // pred_check_branch
          %227 = sbr.rel (%p225) target = $region32
        $region31: #{tpu_custom_call.1} parent=27 // pred_region
          %s228 = sand.u32 %s42, 1
          %s229 = scalar_lea.sflag [#allocation3], %s228
          %s230 = sand.u32 %s42, 1
          %s231 = smul.addr %s230, 32
          %s232 = scalar_lea.vmem [#allocation2], %s231
          %s233 = smul.u32 8, %s26
          %235 = vsyncadd %s229, 0
          %s236 = smul.addr %s25, 8
          %s237 = sadd.s32 %s233, %s236
          %s238 = smul.addr %s237, 4
          %s239 = scalar_lea.hbm %s0, %s238
          %s240 = sshll.u32 %s239, 4
          %s241 = int_to_ptr.hbm [resolvable:$true] %s240
          %s242 = sshll.u32 %s232, 4
          %s243 = int_to_ptr.vmem [resolvable:$true] %s242
          %248 = dma.hbm_to_vmem [thread:$0]  %s241, 512, %s243, %s229, 64, 64, 4
        $region32: #{tpu_custom_call.1} parent=27 // pred_fallthru
          _
      $region28: #{tpu_custom_call.1} parent=5 // pred_fallthru
        _
      %p249 = scmp.le.s32.totalorder 1, %s18
      %p250 = scmp.lt.s32.totalorder %s18, 3
      %p251 = pnand %p249, %p250
      %p252 = pneg %p251
      // Predicated region
      $region33: #{tpu_custom_call.1} parent=5 // pred_check
        _
      $region34: #{tpu_custom_call.1} parent=5 // pred_check_branch
        %254 = sbr.rel (%p251) target = $region36
      $region35: #{tpu_custom_call.1} parent=5 // pred_region
        %s255 = ssub.s32 %s18, 1
        %s256 = sand.u32 %s45, 1
        %s257 = scalar_lea.sflag [#allocation3], %s256
        %s258 = sand.u32 %s45, 1
        %s259 = smul.addr %s258, 32
        %s260 = scalar_lea.vmem [#allocation2], %s259
        // Predicated region
        $region37: #{tpu_custom_call.1} parent=35 // pred_check
          %p261 = pneg %p58
        $region38: #{tpu_custom_call.1} parent=35 // pred_check_branch
          %263 = sbr.rel (%p261) target = $region40
        $region39: #{tpu_custom_call.1} parent=35 // pred_region
          %265 = dma.done %s257, 512
        $region40: #{tpu_custom_call.1} parent=35 // pred_fallthru
          _
        // Predicated region
        $region41: #{tpu_custom_call.1} parent=35 // pred_check
          %p266 = pneg %p84
        $region42: #{tpu_custom_call.1} parent=35 // pred_check_branch
          %268 = sbr.rel (%p266) target = $region44
        $region43: #{tpu_custom_call.1} parent=35 // pred_region
          %270 = dma.done [#allocation6], 128
        $region44: #{tpu_custom_call.1} parent=35 // pred_fallthru
          _
        // Predicated region
        $region45: #{tpu_custom_call.1} parent=35 // pred_check
          %p271 = pneg %p110
        $region46: #{tpu_custom_call.1} parent=35 // pred_check_branch
          %273 = sbr.rel (%p271) target = $region48
        $region47: #{tpu_custom_call.1} parent=35 // pred_region
          %275 = dma.done [#allocation6], 128
        $region48: #{tpu_custom_call.1} parent=35 // pred_fallthru
          _
        // Predicated region
        $region49: #{tpu_custom_call.1} parent=35 // pred_check
          %p276 = pneg %p136
        $region50: #{tpu_custom_call.1} parent=35 // pred_check_branch
          %278 = sbr.rel (%p276) target = $region52
        $region51: #{tpu_custom_call.1} parent=35 // pred_region
          %280 = dma.done [#allocation9], 128
        $region52: #{tpu_custom_call.1} parent=35 // pred_fallthru
          _
        %s281 = sand.u32 %s45, 1
        %s282 = scalar_lea.sflag [#allocation3], %s281
        %s283 = sand.u32 %s45, 1
        %s284 = smul.addr %s283, 32
        %s285 = scalar_lea.vmem [#allocation2], %s284
        %p286 = pneg %p58
        %p287 = pneg %p55
        %p288 = pneg %p84
        %p289 = pneg %p81
        %p290 = pneg %p110
        %p291 = pneg %p107
        %p292 = pneg %p136
        %p293 = pneg %p133
        %p294 = pneg %p164
        %p295 = pneg %p161
        %s296 = sand.u32 %s151, 1
        %s297 = scalar_lea.sflag [#allocation4], %s296
        %s298 = sand.u32 %s151, 1
        %s299 = smul.addr %s298, 32
        %s300 = scalar_lea.vmem [#allocation10], %s299
        %s301 = smul.u32 8, %s28
        %s302 = smul.u32 8, %s28
        %v303 = vld [vmem:[%s260] sm:$0xf]
        %v304 = vld [vmem:[%s260 + $0x4] sm:$0xf]
        %v305 = vld [vmem:[%s260 + $0x8] sm:$0xf]
        %v306 = vld [vmem:[%s260 + $0xc] sm:$0xf]
        %v307 = vld [vmem:[%s260 + $0x10] sm:$0xf]
        %v308 = vld [vmem:[%s260 + $0x14] sm:$0xf]
        %v309 = vld [vmem:[%s260 + $0x18] sm:$0xf]
        %v310 = vld [vmem:[%s260 + $0x1c] sm:$0xf]
        %v311 = vld [vmem:[#allocation5] sm:$0xff]
        %v313 = vrot.slane %v311, 1
        %v314 = vrot.slane %v311, 2
        %v315 = vrot.slane %v311, 3
        %v316 = vrot.slane %v311, 4
        %v317 = vrot.slane %v311, 5
        %v318 = vrot.slane %v311, 6
        %v319 = vrot.slane %v311, 7
        %v320 = vld [vmem:[#allocation7] sm:$0xff]
        %v322 = vrot.slane %v320, 1
        %v323 = vrot.slane %v320, 2
        %v324 = vrot.slane %v320, 3
        %v325 = vrot.slane %v320, 4
        %v326 = vrot.slane %v320, 5
        %v327 = vrot.slane %v320, 6
        %v328 = vrot.slane %v320, 7
        %v329 = vld [vmem:[#allocation8] sm:$0xff]
        %v331 = vrot.slane %v329, 1
        %v332 = vrot.slane %v329, 2
        %v333 = vrot.slane %v329, 3
        %v334 = vrot.slane %v329, 4
        %v335 = vrot.slane %v329, 5
        %v336 = vrot.slane %v329, 6
        %v337 = vrot.slane %v329, 7
        %vm338 = vcmask 1047808
        %339 = vrot.lane.b32.xlu0 %v303, 32
        %v340 = vpop.permute.xlu0 %339
        %v341 = vsel %vm338, %v340, %v303
        %342 = vrot.lane.b32.xlu0 %v304, 32
        %v343 = vpop.permute.xlu0 %342
        %v344 = vsel %vm338, %v343, %v304
        %345 = vrot.lane.b32.xlu0 %v305, 32
        %v346 = vpop.permute.xlu0 %345
        %v347 = vsel %vm338, %v346, %v305
        %348 = vrot.lane.b32.xlu0 %v306, 32
        %v349 = vpop.permute.xlu0 %348
        %v350 = vsel %vm338, %v349, %v306
        %351 = vrot.lane.b32.xlu0 %v307, 32
        %v352 = vpop.permute.xlu0 %351
        %v353 = vsel %vm338, %v352, %v307
        %354 = vrot.lane.b32.xlu0 %v308, 32
        %v355 = vpop.permute.xlu0 %354
        %v356 = vsel %vm338, %v355, %v308
        %357 = vrot.lane.b32.xlu0 %v309, 32
        %v358 = vpop.permute.xlu0 %357
        %v359 = vsel %vm338, %v358, %v309
        %360 = vrot.lane.b32.xlu0 %v310, 32
        %v361 = vpop.permute.xlu0 %360
        %v362 = vsel %vm338, %v361, %v310
        %363 = vrot.lane.b32.xlu0 %v341, 32
        %v364 = vpop.permute.xlu0 %363
        %365 = vrot.lane.b32.xlu0 %v344, 32
        %v366 = vpop.permute.xlu0 %365
        %367 = vrot.lane.b32.xlu0 %v347, 32
        %v368 = vpop.permute.xlu0 %367
        %369 = vrot.lane.b32.xlu0 %v350, 32
        %v370 = vpop.permute.xlu0 %369
        %371 = vrot.lane.b32.xlu0 %v353, 32
        %v372 = vpop.permute.xlu0 %371
        %373 = vrot.lane.b32.xlu0 %v356, 32
        %v374 = vpop.permute.xlu0 %373
        %375 = vrot.lane.b32.xlu0 %v359, 32
        %v376 = vpop.permute.xlu0 %375
        %377 = vrot.lane.b32.xlu0 %v362, 32
        %v378 = vpop.permute.xlu0 %377
        %v379 = vsel %vm338, %v364, %v303
        %v380 = vsel %vm338, %v366, %v304
        %v381 = vsel %vm338, %v368, %v305
        %v382 = vsel %vm338, %v370, %v306
        %v383 = vsel %vm338, %v372, %v307
        %v384 = vsel %vm338, %v374, %v308
        %v385 = vsel %vm338, %v376, %v309
        %v386 = vsel %vm338, %v378, %v310
        %v387 = vperm.slane %v311, 0
        %v388 = vperm.slane %v313, 0
        %v389 = vperm.slane %v314, 0
        %v390 = vperm.slane %v315, 0
        %v391 = vperm.slane %v316, 0
        %v392 = vperm.slane %v317, 0
        %v393 = vperm.slane %v318, 0
        %v394 = vperm.slane %v319, 0
        %v403 = vmul.f32 %v303, %v387
        %v404 = vmul.f32 %v304, %v388
        %v405 = vmul.f32 %v305, %v389
        %v406 = vmul.f32 %v306, %v390
        %v407 = vmul.f32 %v307, %v391
        %v408 = vmul.f32 %v308, %v392
        %v409 = vmul.f32 %v309, %v393
        %v410 = vmul.f32 %v310, %v394
        %v411 = vperm.slane %v320, 0
        %v412 = vperm.slane %v322, 0
        %v413 = vperm.slane %v323, 0
        %v414 = vperm.slane %v324, 0
        %v415 = vperm.slane %v325, 0
        %v416 = vperm.slane %v326, 0
        %v417 = vperm.slane %v327, 0
        %v418 = vperm.slane %v328, 0
        %419 = vrot.lane.b32.xlu0 %v411, 1
        %v420 = vpop.permute.xlu0 %419
        %421 = vrot.lane.b32.xlu0 %v412, 1
        %v422 = vpop.permute.xlu0 %421
        %423 = vrot.lane.b32.xlu0 %v413, 1
        %v424 = vpop.permute.xlu0 %423
        %425 = vrot.lane.b32.xlu0 %v414, 1
        %v426 = vpop.permute.xlu0 %425
        %427 = vrot.lane.b32.xlu0 %v415, 1
        %v428 = vpop.permute.xlu0 %427
        %429 = vrot.lane.b32.xlu0 %v416, 1
        %v430 = vpop.permute.xlu0 %429
        %431 = vrot.lane.b32.xlu0 %v417, 1
        %v432 = vpop.permute.xlu0 %431
        %433 = vrot.lane.b32.xlu0 %v418, 1
        %v434 = vpop.permute.xlu0 %433
        %v443 = vmul.f32 %v379, %v420
        %v444 = vmul.f32 %v380, %v422
        %v445 = vmul.f32 %v381, %v424
        %v446 = vmul.f32 %v382, %v426
        %v447 = vmul.f32 %v383, %v428
        %v448 = vmul.f32 %v384, %v430
        %v449 = vmul.f32 %v385, %v432
        %v450 = vmul.f32 %v386, %v434
        %459 = vrot.lane.b32.xlu0 %v443, 127
        %v460 = vpop.permute.xlu0 %459
        %461 = vrot.lane.b32.xlu0 %v444, 127
        %v462 = vpop.permute.xlu0 %461
        %463 = vrot.lane.b32.xlu0 %v445, 127
        %v464 = vpop.permute.xlu0 %463
        %465 = vrot.lane.b32.xlu0 %v446, 127
        %v466 = vpop.permute.xlu0 %465
        %467 = vrot.lane.b32.xlu0 %v447, 127
        %v468 = vpop.permute.xlu0 %467
        %469 = vrot.lane.b32.xlu0 %v448, 127
        %v470 = vpop.permute.xlu0 %469
        %471 = vrot.lane.b32.xlu0 %v449, 127
        %v472 = vpop.permute.xlu0 %471
        %473 = vrot.lane.b32.xlu0 %v450, 127
        %v474 = vpop.permute.xlu0 %473
        %v483 = vadd.f32 %v403, %v460
        %v484 = vadd.f32 %v404, %v462
        %v485 = vadd.f32 %v405, %v464
        %v486 = vadd.f32 %v406, %v466
        %v487 = vadd.f32 %v407, %v468
        %v488 = vadd.f32 %v408, %v470
        %v489 = vadd.f32 %v409, %v472
        %v490 = vadd.f32 %v410, %v474
        %v491 = vperm.slane %v329, 0
        %v492 = vperm.slane %v331, 0
        %v493 = vperm.slane %v332, 0
        %v494 = vperm.slane %v333, 0
        %v495 = vperm.slane %v334, 0
        %v496 = vperm.slane %v335, 0
        %v497 = vperm.slane %v336, 0
        %v498 = vperm.slane %v337, 0
        %499 = vrot.lane.b32.xlu0 %v491, 31
        %v500 = vpop.permute.xlu0 %499
        %501 = vrot.lane.b32.xlu0 %v492, 31
        %v502 = vpop.permute.xlu0 %501
        %503 = vrot.lane.b32.xlu0 %v493, 31
        %v504 = vpop.permute.xlu0 %503
        %505 = vrot.lane.b32.xlu0 %v494, 31
        %v506 = vpop.permute.xlu0 %505
        %507 = vrot.lane.b32.xlu0 %v495, 31
        %v508 = vpop.permute.xlu0 %507
        %509 = vrot.lane.b32.xlu0 %v496, 31
        %v510 = vpop.permute.xlu0 %509
        %511 = vrot.lane.b32.xlu0 %v497, 31
        %v512 = vpop.permute.xlu0 %511
        %513 = vrot.lane.b32.xlu0 %v498, 31
        %v514 = vpop.permute.xlu0 %513
        %v523 = vmul.f32 %v379, %v500
        %v524 = vmul.f32 %v380, %v502
        %v525 = vmul.f32 %v381, %v504
        %v526 = vmul.f32 %v382, %v506
        %v527 = vmul.f32 %v383, %v508
        %v528 = vmul.f32 %v384, %v510
        %v529 = vmul.f32 %v385, %v512
        %v530 = vmul.f32 %v386, %v514
        %539 = vrot.lane.b32.xlu0 %v523, 97
        %v540 = vpop.permute.xlu0 %539
        %541 = vrot.lane.b32.xlu0 %v524, 97
        %v542 = vpop.permute.xlu0 %541
        %543 = vrot.lane.b32.xlu0 %v525, 97
        %v544 = vpop.permute.xlu0 %543
        %545 = vrot.lane.b32.xlu0 %v526, 97
        %v546 = vpop.permute.xlu0 %545
        %547 = vrot.lane.b32.xlu0 %v527, 97
        %v548 = vpop.permute.xlu0 %547
        %549 = vrot.lane.b32.xlu0 %v528, 97
        %v550 = vpop.permute.xlu0 %549
        %551 = vrot.lane.b32.xlu0 %v529, 97
        %v552 = vpop.permute.xlu0 %551
        %553 = vrot.lane.b32.xlu0 %v530, 97
        %v554 = vpop.permute.xlu0 %553
        %v563 = vadd.f32 %v483, %v540
        %v564 = vadd.f32 %v484, %v542
        %v565 = vadd.f32 %v485, %v544
        %v566 = vadd.f32 %v486, %v546
        %v567 = vadd.f32 %v487, %v548
        %v568 = vadd.f32 %v488, %v550
        %v569 = vadd.f32 %v489, %v552
        %v570 = vadd.f32 %v490, %v554
        %vm571 = vcmask 257024
        %572 = vst.msk [vmem:[%s300] sm:$0xf] %vm571, %v563
        %573 = vst.msk [vmem:[%s300 + $0x4] sm:$0xf] %vm571, %v564
        %574 = vst.msk [vmem:[%s300 + $0x8] sm:$0xf] %vm571, %v565
        %575 = vst.msk [vmem:[%s300 + $0xc] sm:$0xf] %vm571, %v566
        %576 = vst.msk [vmem:[%s300 + $0x10] sm:$0xf] %vm571, %v567
        %577 = vst.msk [vmem:[%s300 + $0x14] sm:$0xf] %vm571, %v568
        %578 = vst.msk [vmem:[%s300 + $0x18] sm:$0xf] %vm571, %v569
        %579 = vst.msk [vmem:[%s300 + $0x1c] sm:$0xf] %vm571, %v570
        %s580 = sand.u32 %s151, 1
        %s581 = scalar_lea.sflag [#allocation4], %s580
        %s582 = sand.u32 %s151, 1
        %s583 = smul.addr %s582, 32
        %s584 = scalar_lea.vmem [#allocation10], %s583
        // Predicated region
        $region53: #{tpu_custom_call.1} parent=35 // pred_check
          %p585 = pneg %p161
        $region54: #{tpu_custom_call.1} parent=35 // pred_check_branch
          %587 = sbr.rel (%p585) target = $region56
        $region55: #{tpu_custom_call.1} parent=35 // pred_region
          %s588 = smul.u32 8, %s28
          %590 = vsyncadd %s581, 0
          %s591 = smul.addr %s27, 8
          %s592 = sadd.s32 %s588, %s591
          %s593 = smul.addr %s592, 4
          %s594 = scalar_lea.hbm %s4, %s593
          %s595 = sshll.u32 %s584, 4
          %s596 = int_to_ptr.vmem [resolvable:$true] %s595
          %s597 = sshll.u32 %s594, 4
          %s598 = int_to_ptr.hbm [resolvable:$true] %s597
          %603 = dma.vmem_to_hbm [thread:$0]  %s596, 512, %s598, %s581, 64, 64, 4
        $region56: #{tpu_custom_call.1} parent=35 // pred_fallthru
          _
      $region36: #{tpu_custom_call.1} parent=5 // pred_fallthru
        _
      %p604 = scmp.le.s32.totalorder 2, %s18
      // Predicated region
      $region57: #{tpu_custom_call.1} parent=5 // pred_check
        %p605 = pneg %p604
      $region58: #{tpu_custom_call.1} parent=5 // pred_check_branch
        %607 = sbr.rel (%p605) target = $region60
      $region59: #{tpu_custom_call.1} parent=5 // pred_region
        %s608 = ssub.s32 %s18, 2
        // Predicated region
        $region61: #{tpu_custom_call.1} parent=59 // pred_check
          %p609 = pneg %p167
        $region62: #{tpu_custom_call.1} parent=59 // pred_check_branch
          %611 = sbr.rel (%p609) target = $region64
        $region63: #{tpu_custom_call.1} parent=59 // pred_region
          %s612 = sand.u32 %s152, 1
          %s613 = scalar_lea.sflag [#allocation4], %s612
          %s614 = sand.u32 %s152, 1
          %s615 = smul.addr %s614, 32
          %s616 = scalar_lea.vmem [#allocation10], %s615
          %618 = dma.done %s613, 512
        $region64: #{tpu_custom_call.1} parent=59 // pred_fallthru
          _
      $region60: #{tpu_custom_call.1} parent=5 // pred_fallthru
        _
    $region6: #{tpu_custom_call.1} parent=1 // loop_footer
      %s22 = sadd.s32 1, %s18
    $region7: #{tpu_custom_call.1} parent=1 // loop_footer_branch
      %17 = sbr.rel target = $region3
    $region8: #{tpu_custom_call.1} parent=1 // loop_exit
      _
    %619 = vsyncpa [#allocation3], 1
    %s620 = scalar_lea.sflag [#allocation3], 1
    %621 = vsyncpa %s620, 1
    %622 = vsyncpa [#allocation6], 1
    %623 = vsyncpa [#allocation9], 1
    %624 = vsyncpa [#allocation4], 1
    %s625 = scalar_lea.sflag [#allocation4], 1
    %626 = vsyncpa %s625, 1

</llo_original>
